<compile_context>
chip_gen: v6e
topology: v6e:2x2x1
jax: 0.10.0
libtpu: 0.0.40
codegen_flags: <defaults>
</compile_context>

<pallas_src>
import functools
import math

import numpy as np
import jax
import jax.numpy as jnp
from jax.experimental import pallas as pl
from jax.experimental.pallas import tpu as pltpu


def _round_up(x, m):
    return (x + m - 1) // m * m


def _pick_tile(dim, max_tile, align):
    """Largest tile <= ~max_tile that keeps padding minimal."""
    dim_a = _round_up(dim, align)
    if dim_a <= max_tile:
        return dim_a
    nblocks = -(-dim // max_tile)            # cdiv
    return _round_up(-(-dim // nblocks), align)


def _vmem_est(tm, tn, tk, xsz, wsz, osz):
    # Double-buffered x / W / bias / out tiles + the f32 accumulator /
    # epilogue temporaries (previously un-budgeted).
    return (2 * tm * tk * xsz + 2 * tn * tk * wsz + 2 * tn * 4
            + 2 * tm * tn * osz + tm * tn * 4)


def _sine_fused_kernel(omega, compute_dtype, x_ref, w_ref, b_ref, o_ref):
    # x_ref: (tm, K) native dtype; w_ref: (tn, K) native nn.Linear layout;
    # b_ref: (1, tn) f32; o_ref: (tm, tn) out dtype.
    x = x_ref[...].astype(compute_dtype)          # cast in-kernel (VALU, free-ish)
    w = w_ref[...].astype(compute_dtype)
    acc = jax.lax.dot_general(                    # (tm,K) x (tn,K) -> (tm,tn)
        x, w, dimension_numbers=(((1,), (1,)), ((), ())),
        preferred_element_type=jnp.float32)
    # f32 epilogue: omega applied post-accumulation for accuracy; sin in f32.
    o_ref[...] = jnp.sin(omega * (acc + b_ref[...])).astype(o_ref.dtype)


def _sine_ktiled_kernel(omega, compute_dtype, x_ref, w_ref, b_ref, o_ref, acc_ref):
    k = pl.program_id(2)

    @pl.when(k == 0)
    def _():
        acc_ref[...] = jnp.zeros_like(acc_ref)

    x = x_ref[...].astype(compute_dtype)
    w = w_ref[...].astype(compute_dtype)
    acc_ref[...] += jax.lax.dot_general(
        x, w, dimension_numbers=(((1,), (1,)), ((), ())),
        preferred_element_type=jnp.float32)

    @pl.when(k == pl.num_programs(2) - 1)
    def _():
        o_ref[...] = jnp.sin(omega * (acc_ref[...] + b_ref[...])).astype(o_ref.dtype)


def sine_layer(x, weight, bias, *, omega_0=30.0, out_dtype=None,
               compute_dtype=jnp.bfloat16, tm_max=512, tn_max=512):
    """SIREN SineLayer forward: sin(omega_0 * (x @ weight.T + bias)).

    x: (M, K); weight: (N, K) (PyTorch nn.Linear layout, fed as-is); bias: (N,).
    """
    M, K = x.shape
    N, Kw = weight.shape
    assert K == Kw and bias.shape == (N,)
    out_dtype = x.dtype if out_dtype is None else out_dtype
    osz = np.dtype(out_dtype).itemsize
    xsz = np.dtype(x.dtype).itemsize
    wsz = np.dtype(weight.dtype).itemsize

    # bf16-packed output rows want 16-row granularity; f32 needs only 8.
    m_align = 8 if osz >= 4 else 16

    # ---- tile selection: minimal padding, weight-resident when it fits ----
    n_base = _round_up(N, 128)
    if 2 * n_base * K * wsz <= (8 << 20):
        tn = n_base                      # whole weight slab resident in VMEM
    else:
        tn = _pick_tile(N, tn_max, 128)
    tm = _pick_tile(M, tm_max, m_align)
    tk = K                               # untiled K unless VMEM-forced below

    soft_budget = 40 << 20               # headroom under v7x's 64 MiB physical
    while _vmem_est(tm, tn, tk, xsz, wsz, osz) > soft_budget:
        if K % 128 == 0 and tk % 256 == 0:
            tk //= 2                     # K-tile (stays a multiple of 128)
        elif tm > 2 * m_align:
            tm = _round_up(tm // 2, m_align)
        elif tn > 256:
            tn = _round_up(tn // 2, 128)
        else:
            break

    m_pad = _round_up(M, tm)
    n_pad = _round_up(N, tn)
    grid_i = m_pad // tm
    grid_j = n_pad // tn

    # Give v7x's two TensorCores work even on tiny problems.
    if grid_i * grid_j == 1 and tm % 2 == 0 and (tm // 2) % m_align == 0:
        tm //= 2
        m_pad = _round_up(M, tm)
        grid_i = m_pad // tm

    # ---- padding (no-pad is the common case for SIREN-shaped layers) ----
    x_p = x if m_pad == M else jnp.pad(x, ((0, m_pad - M), (0, 0)))
    w_p = weight
    b_p = bias.astype(jnp.float32)
    if n_pad != N:
        w_p = jnp.pad(w_p, ((0, n_pad - N), (0, 0)))   # zero out-feature rows
        b_p = jnp.pad(b_p, (0, n_pad - N))
    b2 = b_p.reshape(1, n_pad)
    # NOTE: padded x rows produce sin(omega_0 * b) != 0; they are sliced off
    # below and must never be forwarded un-sliced to a next layer.

    kt = K // tk
    omega = float(omega_0)

    vmem_limit = int(min(48 << 20,
                         max(_vmem_est(tm, tn, tk, xsz, wsz, osz) * 1.5 + (4 << 20),
                             24 << 20)))

    cost = pl.CostEstimate(
        flops=2 * m_pad * K * n_pad,
        transcendentals=m_pad * n_pad,
        bytes_accessed=(m_pad * K * xsz + n_pad * K * wsz
                        + n_pad * 4 + m_pad * n_pad * osz),
    )

    if kt == 1:
        kernel = functools.partial(_sine_fused_kernel, omega, compute_dtype)
        grid_spec = pltpu.PrefetchScalarGridSpec(
            num_scalar_prefetch=0,
            grid=(grid_i, grid_j),
            in_specs=[
                pl.BlockSpec((tm, K), lambda i, j: (i, 0)),   # x row tile (native dtype)
                pl.BlockSpec((tn, K), lambda i, j: (j, 0)),   # weight rows, (N, K) layout
                pl.BlockSpec((1, tn), lambda i, j: (0, j)),   # bias tile (f32)
            ],
            out_specs=pl.BlockSpec((tm, tn), lambda i, j: (i, j)),
        )
        dim_sem = ("parallel", "parallel")
    else:
        kernel = functools.partial(_sine_ktiled_kernel, omega, compute_dtype)
        grid_spec = pltpu.PrefetchScalarGridSpec(
            num_scalar_prefetch=0,
            grid=(grid_i, grid_j, kt),
            in_specs=[
                pl.BlockSpec((tm, tk), lambda i, j, k: (i, k)),
                pl.BlockSpec((tn, tk), lambda i, j, k: (j, k)),
                pl.BlockSpec((1, tn), lambda i, j, k: (0, j)),
            ],
            out_specs=pl.BlockSpec((tm, tn), lambda i, j, k: (i, j)),
            scratch_shapes=[pltpu.VMEM((tm, tn), jnp.float32)],
        )
        dim_sem = ("parallel", "parallel", "arbitrary")

    out = pl.pallas_call(
        kernel,
        out_shape=jax.ShapeDtypeStruct((m_pad, n_pad), out_dtype),
        grid_spec=grid_spec,
        compiler_params=pltpu.CompilerParams(
            dimension_semantics=dim_sem,
            vmem_limit_bytes=vmem_limit,
        ),
        cost_estimate=cost,
    )(x_p, w_p, b2)

    if m_pad != M or n_pad != N:
        out = out[:M, :N]      # skip the extra HBM pass when nothing was padded
    return out


if __name__ == "__main__":
    # Small shapes consistent with the module's forward.
    batch = 16
    in_features = 32
    out_features = 32
    omega_0 = 30.0
    is_first = False

    key = jax.random.PRNGKey(0)
    kx, kw, kb = jax.random.split(key, 3)

    # Deterministic parameter init mirroring the PyTorch __init__.
    if is_first:
        width = 1.0 / in_features
    else:
        width = math.sqrt(6.0 / in_features) / omega_0
    weight = jax.random.uniform(
        kw, (out_features, in_features), jnp.float32, minval=-width, maxval=width
    )
    # nn.Linear default bias init: U(-1/sqrt(in), 1/sqrt(in))
    b_bound = 1.0 / math.sqrt(in_features)
    bias = jax.random.uniform(
        kb, (out_features,), jnp.float32, minval=-b_bound, maxval=b_bound
    )

    x = jax.random.normal(kx, (batch, in_features), jnp.float32)

    out = sine_layer(x, weight, bias, omega_0=omega_0)
    out = jax.block_until_ready(out)
    assert out.shape == (batch, out_features)

    # Reference matching the kernel's bf16-fed / f32-accumulate / f32-epilogue path.
    ref_matched = jnp.sin(omega_0 * (
        jnp.dot(x.astype(jnp.bfloat16), weight.T.astype(jnp.bfloat16),
                preferred_element_type=jnp.float32) + bias))
    assert jnp.allclose(out, ref_matched, atol=2e-4, rtol=2e-4)

    # Loose check against the exact f32 PyTorch forward (bf16 MXU rounding).
    ref_f32 = jnp.sin(omega_0 * (x @ weight.T + bias))
    assert jnp.allclose(out, ref_f32, atol=5e-2, rtol=0.0)

    print("KERNEL_OK")
</pallas_src>

<mosaic_0001>
module attributes {stable_mosaic.version = 11 : i64} {
  func.func @_sine_fused_kernel(%arg0: i32, %arg1: i32, %arg2: memref<8x32xf32, #tpu.memory_space<vmem>>, %arg3: memref<128x32xf32, #tpu.memory_space<vmem>>, %arg4: memref<1x128xf32, #tpu.memory_space<vmem>>, %arg5: memref<8x128xf32, #tpu.memory_space<vmem>>) attributes {dimension_semantics = [#tpu.dimension_semantics<parallel>, #tpu.dimension_semantics<parallel>], iteration_bounds = array<i64: 2, 1>, scalar_prefetch = 0 : i64, scratch_operands = 0 : i64, tpu.core_type = #tpu.core_type<tc>, window_params = [{transform_indices = @transform_0, window_bounds = array<i64: 8, 32>}, {transform_indices = @transform_1, window_bounds = array<i64: 128, 32>}, {transform_indices = @transform_2, window_bounds = array<i64: 1, 128>}, {transform_indices = @transform_3, window_bounds = array<i64: 8, 128>}]} {
    %c0 = arith.constant 0 : index
    %c0_0 = arith.constant 0 : index
    %0 = vector.load %arg2[%c0, %c0_0] : memref<8x32xf32, #tpu.memory_space<vmem>>, vector<8x32xf32>
    %1 = arith.truncf %0 : vector<8x32xf32> to vector<8x32xbf16>
    %c0_1 = arith.constant 0 : index
    %c0_2 = arith.constant 0 : index
    %2 = vector.load %arg3[%c0_1, %c0_2] : memref<128x32xf32, #tpu.memory_space<vmem>>, vector<128x32xf32>
    %3 = arith.truncf %2 : vector<128x32xf32> to vector<128x32xbf16>
    %cst = arith.constant dense<0.000000e+00> : vector<8x128xf32>
    %4 = tpu.matmul %1, %3, %cst {dimension_numbers = #tpu.dot_dimension_numbers<[1], [1], [0], [0], [0, 0, 1, 0], [], []>} : vector<8x32xbf16>, vector<128x32xbf16>, vector<8x128xf32> -> vector<8x128xf32>
    %c0_3 = arith.constant 0 : index
    %c0_4 = arith.constant 0 : index
    %5 = vector.load %arg4[%c0_3, %c0_4] : memref<1x128xf32, #tpu.memory_space<vmem>>, vector<1x128xf32>
    %6 = vector.broadcast %5 : vector<1x128xf32> to vector<8x128xf32>
    %7 = arith.addf %4, %6 : vector<8x128xf32>
    %cst_5 = arith.constant 3.000000e+01 : f32
    %8 = vector.broadcast %cst_5 : f32 to vector<8x128xf32>
    %9 = arith.mulf %8, %7 : vector<8x128xf32>
    %10 = math.sin %9 : vector<8x128xf32>
    %c0_6 = arith.constant 0 : index
    %c0_7 = arith.constant 0 : index
    %11 = vector.load %arg5[%c0_6, %c0_7] : memref<8x128xf32, #tpu.memory_space<vmem>>, vector<8x128xf32>
    tpu.vector_store %arg5[%c0_6, %c0_7], %10 {strides = array<i32>} : memref<8x128xf32, #tpu.memory_space<vmem>>, vector<8x128xf32>,
    return
  }
  func.func @transform_0(%arg0: i32, %arg1: i32) -> (i32, i32) {
    %c0_i32 = arith.constant 0 : i32
    %c0_i32_0 = arith.constant 0 : i32
    return %arg0, %c0_i32 : i32, i32
  }
  func.func @transform_1(%arg0: i32, %arg1: i32) -> (i32, i32) {
    %c0_i32 = arith.constant 0 : i32
    %c0_i32_0 = arith.constant 0 : i32
    return %arg1, %c0_i32 : i32, i32
  }
  func.func @transform_2(%arg0: i32, %arg1: i32) -> (i32, i32) {
    %c0_i32 = arith.constant 0 : i32
    %c0_i32_0 = arith.constant 0 : i32
    return %c0_i32, %arg1 : i32, i32
  }
  func.func @transform_3(%arg0: i32, %arg1: i32) -> (i32, i32) {
    %c0_i32 = arith.constant 0 : i32
    return %arg0, %arg1 : i32, i32
  }
}

</mosaic_0001>

<llo_original>
// kernel: tpu_custom_call.1
$region0: #{tpu_custom_call.1}
  #allocation0 [shape = 'u32[]', space=smem, size = 0x4, offset = 0x4, fixed_abs, tag = 'smem constant byte address 0x4 - core index']
  #allocation1 [shape = 'u32[144,128]{1,0:T(1,128)}', space=vmem, size = 0x12000, scoped, tag = 'internal scratch']
  %s0 = inlined_call_operand.vmem [shape: f32[16,32], index: 0, kind: input, shape index: {}]
  %s1 = inlined_call_operand.vmem [shape: f32[128,32], index: 1, kind: input, shape index: {}]
  %s2 = inlined_call_operand.vmem [shape: f32[1,128], index: 2, kind: input, shape index: {}]
  %s3 = inlined_call_operand.hbm [shape: f32[16,128], index: 3, kind: output, shape index: {}]
  %s4 = sld [smem:[#allocation0]]
  $region45: #{tpu_custom_call.1} parent=0
    _
  %s6 = ssub.s32 1, %s4
  %s7 = scalar_select 0, %s6, %s4
  $region1: #{tpu_custom_call.1} parent=0
    #allocation2 [shape = 'u8[8192]{0}', space=vmem, size = 0x2000, scoped, tag = 'output window, operand 0']
    #allocation3 [shape = 's32[2]{0}', space=sflag, size = 0x8, scoped, tag = 'scoped memory for tpu_custom_call.1']
    %8 = vsyncpa [#allocation3], 0
    %s9 = scalar_lea.sflag [#allocation3], 1
    %10 = vsyncpa %s9, 0
    loop: start=0, step=1, limit=4
    $region2: #{tpu_custom_call.1} parent=1 // loop_pre_header
      _
    $region3: #{tpu_custom_call.1} parent=1 // loop_header
      %s12 = sphi 0, %s16
      %p13 = scmp.ge.s32.totalorder %s12, 4
      %s19 = sphi 0, %s31
      %s20 = sphi 0, %s27
      %s21 = sphi 0, %s19
      %s22 = sphi 0, %s20
      %s23 = sphi 0, %s21
      %s24 = sphi 0, %s22
      %s34 = sphi 0, %s36
      %s37 = sphi 0, %s34
      %s38 = sphi 0, %s37
      %s54 = sphi 0, %s38
      %s60 = sphi 0, %s62
      %s63 = sphi 0, %s60
      %s64 = sphi 0, %s63
      %s80 = sphi 0, %s64
      %s86 = sphi 0, %s88
      %s89 = sphi 0, %s86
      %s90 = sphi 0, %s89
      %s106 = sphi 0, %s90
      %s114 = sphi 0, %s116
      %s117 = sphi 0, %s114
      %s118 = sphi 0, %s117
      %s134 = sphi 0, %s118
    $region4: #{tpu_custom_call.1} parent=1 // loop_header_branch
      %15 = sbr.rel (%p13) target = $region8
    $region5: #{tpu_custom_call.1} parent=1 // loop_body
      %s17 = ssub.s32 %s12, 1
      %s18 = ssub.s32 %s12, 2
      %s25 = sadd.s32 1, %s20
      %p26 = scmp.ge.s32.totalorder %s25, 1
      %s27 = scalar_select %p26, 0, %s25
      %s28 = sadd.s32 1, %s19
      %s29 = scalar_select %p26, %s28, %s19
      %p30 = scmp.ge.s32.totalorder %s29, 2
      %s31 = scalar_select %p30, 0, %s29
      %s32 = ssub.s32 %s19, %s31
      %p33 = scmp.eq.s32.totalorder %s32, 0
      %s35 = sadd.s32 %s34, 1
      %s36 = scalar_select %p33, %s34, %s35
      %p39 = pneg %p33
      %p40 = scmp.eq.s32.totalorder %s12, 1
      %p41 = por %p39, %p40
      %p42 = scmp.ne.s32.totalorder %s34, %s37
      %p43 = scmp.eq.s32.totalorder %s12, 0
      %p44 = por %p42, %p43
      %p45 = scmp.ne.s32.totalorder %s34, %s37
      %p46 = scmp.eq.s32.totalorder %s17, 1
      %p47 = por %p45, %p46
      %p48 = scmp.ne.s32.totalorder %s37, %s38
      %p49 = scmp.eq.s32.totalorder %s17, 0
      %p50 = por %p48, %p49
      %p51 = scmp.ne.s32.totalorder %s37, %s38
      %p52 = scmp.eq.s32.totalorder %s18, 1
      %p53 = por %p51, %p52
      %p55 = scmp.ne.s32.totalorder %s38, %s54
      %p56 = scmp.eq.s32.totalorder %s18, 0
      %p57 = por %p55, %p56
      %s58 = ssub.s32 %s20, %s27
      %p59 = scmp.eq.s32.totalorder %s58, 0
      %s61 = sadd.s32 %s60, 1
      %s62 = scalar_select %p59, %s60, %s61
      %p65 = pneg %p59
      %p66 = scmp.eq.s32.totalorder %s12, 1
      %p67 = por %p65, %p66
      %p68 = scmp.ne.s32.totalorder %s60, %s63
      %p69 = scmp.eq.s32.totalorder %s12, 0
      %p70 = por %p68, %p69
      %p71 = scmp.ne.s32.totalorder %s60, %s63
      %p72 = scmp.eq.s32.totalorder %s17, 1
      %p73 = por %p71, %p72
      %p74 = scmp.ne.s32.totalorder %s63, %s64
      %p75 = scmp.eq.s32.totalorder %s17, 0
      %p76 = por %p74, %p75
      %p77 = scmp.ne.s32.totalorder %s63, %s64
      %p78 = scmp.eq.s32.totalorder %s18, 1
      %p79 = por %p77, %p78
      %p81 = scmp.ne.s32.totalorder %s64, %s80
      %p82 = scmp.eq.s32.totalorder %s18, 0
      %p83 = por %p81, %p82
      %s84 = ssub.s32 %s20, %s27
      %p85 = scmp.eq.s32.totalorder %s84, 0
      %s87 = sadd.s32 %s86, 1
      %s88 = scalar_select %p85, %s86, %s87
      %p91 = pneg %p85
      %p92 = scmp.eq.s32.totalorder %s12, 1
      %p93 = por %p91, %p92
      %p94 = scmp.ne.s32.totalorder %s86, %s89
      %p95 = scmp.eq.s32.totalorder %s12, 0
      %p96 = por %p94, %p95
      %p97 = scmp.ne.s32.totalorder %s86, %s89
      %p98 = scmp.eq.s32.totalorder %s17, 1
      %p99 = por %p97, %p98
      %p100 = scmp.ne.s32.totalorder %s89, %s90
      %p101 = scmp.eq.s32.totalorder %s17, 0
      %p102 = por %p100, %p101
      %p103 = scmp.ne.s32.totalorder %s89, %s90
      %p104 = scmp.eq.s32.totalorder %s18, 1
      %p105 = por %p103, %p104
      %p107 = scmp.ne.s32.totalorder %s90, %s106
      %p108 = scmp.eq.s32.totalorder %s18, 0
      %p109 = por %p107, %p108
      %s110 = ssub.s32 %s19, %s31
      %s111 = ssub.s32 %s20, %s27
      %s112 = sor.u32 %s110, %s111
      %p113 = scmp.eq.s32.totalorder %s112, 0
      %s115 = sadd.s32 %s114, 1
      %s116 = scalar_select %p113, %s114, %s115
      %p119 = pneg %p113
      %p120 = scmp.eq.s32.totalorder %s12, 1
      %p121 = por %p119, %p120
      %p122 = scmp.ne.s32.totalorder %s114, %s117
      %p123 = scmp.eq.s32.totalorder %s12, 0
      %p124 = por %p122, %p123
      %p125 = scmp.ne.s32.totalorder %s114, %s117
      %p126 = scmp.eq.s32.totalorder %s17, 1
      %p127 = por %p125, %p126
      %p128 = scmp.ne.s32.totalorder %s117, %s118
      %p129 = scmp.eq.s32.totalorder %s17, 0
      %p130 = por %p128, %p129
      %p131 = scmp.ne.s32.totalorder %s117, %s118
      %p132 = scmp.eq.s32.totalorder %s18, 1
      %p133 = por %p131, %p132
      %p135 = scmp.ne.s32.totalorder %s118, %s134
      %p136 = scmp.eq.s32.totalorder %s18, 0
      %p137 = por %p135, %p136
      %p138 = scmp.le.s32.totalorder 1, %s12
      %p139 = scmp.lt.s32.totalorder %s12, 3
      %p140 = pnand %p138, %p139
      %p141 = pneg %p140
      // Predicated region
      $region9: #{tpu_custom_call.1} parent=5 // pred_check
        _
      $region10: #{tpu_custom_call.1} parent=5 // pred_check_branch
        %143 = sbr.rel (%p140) target = $region12
      $region11: #{tpu_custom_call.1} parent=5 // pred_region
        %s144 = ssub.s32 %s12, 1
        // Predicated region
        $region13: #{tpu_custom_call.1} parent=11 // pred_check
          %p145 = pneg %p76
        $region14: #{tpu_custom_call.1} parent=11 // pred_check_branch
          %147 = sbr.rel (%p145) target = $region16
        $region15: #{tpu_custom_call.1} parent=11 // pred_region
          %s148 = smul.u32 16, %s22
          %p149 = scmp.lt.s32.totalorder %s148, 15
          %s150 = scalar_select %p149, %s148, 15
          %s151 = smul.addr %s150, 8
          %s152 = scalar_lea.vmem %s1, %s151
          %s153 = smul.u32 16, %s22
        $region16: #{tpu_custom_call.1} parent=11 // pred_fallthru
          _
        // Predicated region
        $region17: #{tpu_custom_call.1} parent=11 // pred_check
          %p154 = pneg %p102
        $region18: #{tpu_custom_call.1} parent=11 // pred_check_branch
          %156 = sbr.rel (%p154) target = $region20
        $region19: #{tpu_custom_call.1} parent=11 // pred_region
          %p157 = scmp.lt.s32.totalorder %s22, 0
          %s158 = scalar_select %p157, %s22, 0
          %s159 = scalar_lea.vmem %s2, %s158
        $region20: #{tpu_custom_call.1} parent=11 // pred_fallthru
          _
      $region12: #{tpu_custom_call.1} parent=5 // pred_fallthru
        _
      %p160 = scmp.lt.s32.totalorder %s12, 2
      // Predicated region
      $region21: #{tpu_custom_call.1} parent=5 // pred_check
        %p161 = pneg %p160
      $region22: #{tpu_custom_call.1} parent=5 // pred_check_branch
        %163 = sbr.rel (%p161) target = $region24
      $region23: #{tpu_custom_call.1} parent=5 // pred_region
        // Predicated region
        $region25: #{tpu_custom_call.1} parent=23 // pred_check
          %p164 = pneg %p44
        $region26: #{tpu_custom_call.1} parent=23 // pred_check_branch
          %166 = sbr.rel (%p164) target = $region28
        $region27: #{tpu_custom_call.1} parent=23 // pred_region
          %p167 = scmp.lt.s32.totalorder %s19, 1
          %s168 = scalar_select %p167, %s19, 1
          %s169 = smul.addr %s168, 8
          %s170 = scalar_lea.vmem %s0, %s169
        $region28: #{tpu_custom_call.1} parent=23 // pred_fallthru
          _
      $region24: #{tpu_custom_call.1} parent=5 // pred_fallthru
        _
      %p171 = scmp.le.s32.totalorder 1, %s12
      %p172 = scmp.lt.s32.totalorder %s12, 3
      %p173 = pnand %p171, %p172
      %p174 = pneg %p173
      // Predicated region
      $region29: #{tpu_custom_call.1} parent=5 // pred_check
        _
      $region30: #{tpu_custom_call.1} parent=5 // pred_check_branch
        %176 = sbr.rel (%p173) target = $region32
      $region31: #{tpu_custom_call.1} parent=5 // pred_region
        %s177 = ssub.s32 %s12, 1
        %p178 = scmp.lt.s32.totalorder %s21, 1
        %s179 = scalar_select %p178, %s21, 1
        %s180 = smul.addr %s179, 8
        %s181 = scalar_lea.vmem %s0, %s180
        %p182 = pneg %p50
        %p183 = pneg %p47
        %s184 = smul.u32 16, %s22
        %p185 = scmp.lt.s32.totalorder %s184, 15
        %s186 = scalar_select %p185, %s184, 15
        %s187 = smul.addr %s186, 8
        %s188 = scalar_lea.vmem %s1, %s187
        %p189 = pneg %p76
        %p190 = pneg %p73
        %p191 = scmp.lt.s32.totalorder %s22, 0
        %s192 = scalar_select %p191, %s22, 0
        %s193 = scalar_lea.vmem %s2, %s192
        %p194 = pneg %p102
        %p195 = pneg %p99
        %p196 = pneg %p130
        %p197 = pneg %p127
        %s198 = sand.u32 %s117, 1
        %s199 = scalar_lea.sflag [#allocation3], %s198
        %s200 = sand.u32 %s117, 1
        %s201 = smul.addr %s200, 8
        %s202 = scalar_lea.vmem [#allocation2], %s201
        %p203 = scmp.lt.s32.totalorder %s21, 1
        %s204 = scalar_select %p203, %s21, 1
        %s205 = smul.addr %s204, 8
        %s206 = scalar_lea.vmem %s0, %s205
        %s207 = smul.u32 16, %s22
        %p208 = scmp.lt.s32.totalorder %s207, 15
        %s209 = scalar_select %p208, %s207, 15
        %s210 = smul.addr %s209, 8
        %s211 = scalar_lea.vmem %s1, %s210
        %s212 = smul.u32 16, %s22
        %p213 = scmp.lt.s32.totalorder %s22, 0
        %s214 = scalar_select %p213, %s22, 0
        %s215 = scalar_lea.vmem %s2, %s214
        %v217 = vld [vmem:[%s206] sm:$0xff]
        %v218 = vpack.c.bf16 %v217, %v217
        %v219 = vld [vmem:[%s211] sm:$0xff]
        %v220 = vld [vmem:[%s211 + $0x8] sm:$0xff]
        %v221 = vld [vmem:[%s211 + $0x10] sm:$0xff]
        %v222 = vld [vmem:[%s211 + $0x18] sm:$0xff]
        %v223 = vld [vmem:[%s211 + $0x20] sm:$0xff]
        %v224 = vld [vmem:[%s211 + $0x28] sm:$0xff]
        %v225 = vld [vmem:[%s211 + $0x30] sm:$0xff]
        %v226 = vld [vmem:[%s211 + $0x38] sm:$0xff]
        %v227 = vld [vmem:[%s211 + $0x40] sm:$0xff]
        %v228 = vld [vmem:[%s211 + $0x48] sm:$0xff]
        %v229 = vld [vmem:[%s211 + $0x50] sm:$0xff]
        %v230 = vld [vmem:[%s211 + $0x58] sm:$0xff]
        %v231 = vld [vmem:[%s211 + $0x60] sm:$0xff]
        %v232 = vld [vmem:[%s211 + $0x68] sm:$0xff]
        %v233 = vld [vmem:[%s211 + $0x70] sm:$0xff]
        %v234 = vld [vmem:[%s211 + $0x78] sm:$0xff]
        %v235 = vpack.c.bf16 %v220, %v219
        %v236 = vpack.c.bf16 %v222, %v221
        %v237 = vpack.c.bf16 %v224, %v223
        %v238 = vpack.c.bf16 %v226, %v225
        %v239 = vpack.c.bf16 %v228, %v227
        %v240 = vpack.c.bf16 %v230, %v229
        %v241 = vpack.c.bf16 %v232, %v231
        %v242 = vpack.c.bf16 %v234, %v233
        %v243 = vld [vmem:[%s215] sm:$0x1]
        %v245 = vlaneseq
        %v246 = vshrl.u32 %v245, 7
        %v247 = vsub.s32 0, %v246
        %v248 = vrot.slane %v243, %v247
        %vm250 = vcmask 261120
        %v252 = vsel %vm250, %v218, 0
        %v255 = vsel %vm250, %v235, 0
        %v258 = vsel %vm250, %v236, 0
        %v261 = vsel %vm250, %v237, 0
        %v264 = vsel %vm250, %v238, 0
        %v267 = vsel %vm250, %v239, 0
        %v270 = vsel %vm250, %v240, 0
        %v273 = vsel %vm250, %v241, 0
        %v276 = vsel %vm250, %v242, 0
        %278 = vmatprep.subr.bf16.mxu0 0
        %279 = vmatpush1.bf16.xpose.msra.mxu0 %v276
        %280 = vmatprep.subr.bf16.mxu0 0
        %281 = vmatpush1.bf16.xpose.msra.mxu0 %v273
        %282 = vmatprep.subr.bf16.mxu0 0
        %283 = vmatpush1.bf16.xpose.msra.mxu0 %v270
        %284 = vmatprep.subr.bf16.mxu0 0
        %285 = vmatpush1.bf16.xpose.msra.mxu0 %v267
        %286 = vmatprep.subr.bf16.mxu0 0
        %287 = vmatpush1.bf16.xpose.msra.mxu0 %v264
        %288 = vmatprep.subr.bf16.mxu0 0
        %289 = vmatpush1.bf16.xpose.msra.mxu0 %v261
        %290 = vmatprep.subr.bf16.mxu0 0
        %291 = vmatpush1.bf16.xpose.msra.mxu0 %v258
        %292 = vmatprep.subr.bf16.mxu0 0
        %293 = vmatpush1.bf16.xpose.msra.mxu0 %v255
        %294 = vmatprep.subr.bf16.mxu0 0
        %295 = vmatpush2.bf16.xpose.msra.mxu0 0
        %296 = vmatprep.subr.bf16.mxu0 0
        %297 = vmatpush2.bf16.xpose.msra.mxu0 0
        %298 = vmatprep.subr.bf16.mxu0 0
        %299 = vmatpush2.bf16.xpose.msra.mxu0 0
        %300 = vmatprep.subr.bf16.mxu0 0
        %301 = vmatpush2.bf16.xpose.msra.mxu0 0
        %302 = vmatprep.subr.bf16.mxu0 0
        %303 = vmatpush2.bf16.xpose.msra.mxu0 0
        %304 = vmatprep.subr.bf16.mxu0 0
        %305 = vmatpush2.bf16.xpose.msra.mxu0 0
        %306 = vmatprep.subr.bf16.mxu0 0
        %307 = vmatpush2.bf16.xpose.msra.mxu0 0
        %308 = vmatprep.subr.bf16.mxu0 0
        %309 = vmatpush2.bf16.xpose.msra.mxu0 0
        %310 = vmatprep.mubr.bf16.mxu0 0
        %311 = vmatmul.mubr.bf16.gmra.mxu0 %v252
        %v312 = vpop.f32.mrf.mxu0
        %v313 = vadd.f32 %v248, %v312
        %v314 = vpop.f32.mrf.mxu0
        %v315 = vpop.f32.mrf.mxu0
        %v316 = vpop.f32.mrf.mxu0
        %317 = vdwg.mxu0
        %v318 = vmul.f32 %v313, 30.0
        %v319 = vand.u32 2147483647, %v318
        %vm320 = vcmp.le.f32.partialorder %v319, 0.7853982
        %vm321 = vcmp.lt.s32.totalorder %v318, 0
        %v322 = vand.u32 %v318, 2139095040
        %v323 = vshrl.u32 %v322, 23
        %v324 = vsub.s32 %v323, 127
        %v325 = vand.u32 2147483647, %v318
        %v326 = vand.u32 %v325, 8388607
        %v327 = vor.u32 %v326, 8388608
        %v328 = vsub.s32 0, %v327
        %v329 = vadd.s32 %v324, 1
        %vm330 = vcmp.gt.s32.totalorder %v329, 0
        %v331 = vsel %vm330, %v329, 0
        %v332 = vshrl.u32 %v331, 5
        %v333 = vand.u32 %v331, 31
        %v334 = vsub.s32 32, %v333
        %v335 = vshrl.u32 683565275, %v334
        %v336 = vshll.u32 683565275, %v333
        %v337 = vshrl.u32 2475754826, %v334
        %v338 = vor.u32 %v336, %v337
        %v339 = vshll.u32 2475754826, %v333
        %v340 = vshrl.u32 2131351028, %v334
        %v341 = vor.u32 %v339, %v340
        %v342 = vshll.u32 2131351028, %v333
        %v343 = vshrl.u32 2102212464, %v334
        %v344 = vor.u32 %v342, %v343
        %v345 = vshll.u32 2102212464, %v333
        %v346 = vshrl.u32 920167782, %v334
        %v347 = vor.u32 %v345, %v346
        %v348 = vshll.u32 920167782, %v333
        %v349 = vshrl.u32 1326507024, %v334
        %v350 = vor.u32 %v348, %v349
        %vm351 = vcmp.lt.s32.totalorder %v332, 1
        %vm352 = vcmp.lt.s32.totalorder %v332, 2
        %vm353 = vcmp.lt.s32.totalorder %v332, 3
        %vm354 = vcmp.lt.s32.totalorder %v332, 4
        %v355 = vsel %vm351, %v335, %v338
        %v356 = vsel %vm354, %v344, 2102212464
        %v357 = vsel %vm353, %v341, %v356
        %v358 = vsel %vm352, %v355, %v357
        %v359 = vsel %vm351, %v338, %v341
        %v360 = vsel %vm354, %v347, 920167782
        %v361 = vsel %vm353, %v344, %v360
        %v362 = vsel %vm352, %v359, %v361
        %v363 = vsel %vm351, %v341, %v344
        %v364 = vsel %vm354, %v350, 1326507024
        %v365 = vsel %vm353, %v347, %v364
        %v366 = vsel %vm352, %v363, %v365
        %v367 = vshll.u32 %v327, 8
        %v368 = vmul.u32.u64.compose %v367, %v366
        %v369 = vextract.low.u32 %v368
        %v370 = vextract.high.u32 %v368
        %v371 = vmul.u32.u64.compose %v367, %v362
        %v372 = vextract.low.u32 %v371
        %v373 = vextract.high.u32 %v371
        %v374 = vmul.u32 %v367, %v358
        %v375 = vadd.s32 %v370, %v372
        %vm376 = vc.u32 %v370, %v372
        %v377 = vadd.s32 %v373, 1
        %v378 = vsel %vm376, %v377, %v373
        %v379 = vadd.s32 %v374, %v378
        %v380 = vadd.s32 %v379, 536870912
        %v381 = vshrl.u32 %v380, 30
        %v382 = vshll.u32 %v381, 30
        %v383 = vsub.s32 %v379, %v382
        %vm384 = vcmp.lt.s32.totalorder %v383, 0
        %v385 = vsub.s32 0, %v383
        %v386 = vsel %vm384, %v385, %v383
        %v387 = vclz %v386
        %v388 = vsub.s32 %v387, 2
        %vm389 = vcmp.gt.s32.totalorder 0, %v388
        %v390 = vsel %vm389, 0, %v388
        %v391 = vsub.s32 32, %v390
        %v392 = vshll.u32 %v383, %v390
        %v393 = vshrl.u32 %v375, %v391
        %v394 = vor.u32 %v392, %v393
        %v395 = vsub.s32 4294967266, %v390
        %v396 = vadd.s32 %v395, 127
        %v397 = vshll.u32 %v396, 23
        %v398 = vor.u32 4788187, %v397
        %v399 = vand.u32 2147483647, %v398
        %v401 = vcvt.s32.f32 %v394
        %v402 = vmul.f32 %v401, %v399
        %v403 = vxor.u32 %v402, 2147483648
        %v404 = vsel %vm321, %v403, %v402
        %v405 = vsub.s32 4, %v381
        %v406 = vsel %vm321, %v405, %v381
        %v407 = vsel %vm320, %v318, %v404
        %v408 = vsel %vm320, 0, %v406
        %v409 = vcosq.f32.pop %v407
        %v410 = vsinq.f32.pop %v407
        %vm411 = vweird.f32 %v318
        %v412 = vadd.s32 %v408, 3
        %v413 = vand.u32 %v412, 3
        %vm414 = vcmp.lt.s32.totalorder %v413, 2
        %vm415 = vcmp.eq.s32.totalorder %v413, 0
        %v416 = vxor.u32 %v410, 2147483648
        %v417 = vsel %vm415, %v409, %v416
        %vm418 = vcmp.eq.s32.totalorder %v413, 2
        %v419 = vxor.u32 %v409, 2147483648
        %v420 = vsel %vm418, %v419, %v410
        %v421 = vsel %vm414, %v417, %v420
        %v422 = vsel %vm411, nan, %v421
        %423 = vst [vmem:[%s202] sm:$0xff] %v422
        %s424 = sand.u32 %s117, 1
        %s425 = scalar_lea.sflag [#allocation3], %s424
        %s426 = sand.u32 %s117, 1
        %s427 = smul.addr %s426, 8
        %s428 = scalar_lea.vmem [#allocation2], %s427
        // Predicated region
        $region33: #{tpu_custom_call.1} parent=31 // pred_check
          %p429 = pneg %p127
        $region34: #{tpu_custom_call.1} parent=31 // pred_check_branch
          %431 = sbr.rel (%p429) target = $region36
        $region35: #{tpu_custom_call.1} parent=31 // pred_region
          %s433 = ssub.s32 128, 128
          %434 = vsyncadd %s425, %s433
          %s435 = sadd.s32 %s22, %s21
          %s436 = smul.addr %s435, 128
          %s437 = scalar_lea.hbm %s3, %s436
          %s439 = sshll.u32 %s428, 4
          %s440 = int_to_ptr.vmem [resolvable:$true] %s439
          %442 = dma.vmem_to_hbm [thread:$0]  %s440, 128, %s437, %s425
        $region36: #{tpu_custom_call.1} parent=31 // pred_fallthru
          _
      $region32: #{tpu_custom_call.1} parent=5 // pred_fallthru
        _
      %p443 = scmp.le.s32.totalorder 2, %s12
      // Predicated region
      $region37: #{tpu_custom_call.1} parent=5 // pred_check
        %p444 = pneg %p443
      $region38: #{tpu_custom_call.1} parent=5 // pred_check_branch
        %446 = sbr.rel (%p444) target = $region40
      $region39: #{tpu_custom_call.1} parent=5 // pred_region
        %s447 = ssub.s32 %s12, 2
        // Predicated region
        $region41: #{tpu_custom_call.1} parent=39 // pred_check
          %p448 = pneg %p133
        $region42: #{tpu_custom_call.1} parent=39 // pred_check_branch
          %450 = sbr.rel (%p448) target = $region44
        $region43: #{tpu_custom_call.1} parent=39 // pred_region
          %s451 = sand.u32 %s118, 1
          %s452 = scalar_lea.sflag [#allocation3], %s451
          %s453 = sand.u32 %s118, 1
          %s454 = smul.addr %s453, 8
          %s455 = scalar_lea.vmem [#allocation2], %s454
          %456 = dma.done %s452, 128
        $region44: #{tpu_custom_call.1} parent=39 // pred_fallthru
          _
      $region40: #{tpu_custom_call.1} parent=5 // pred_fallthru
        _
    $region6: #{tpu_custom_call.1} parent=1 // loop_footer
      %s16 = sadd.s32 1, %s12
    $region7: #{tpu_custom_call.1} parent=1 // loop_footer_branch
      %11 = sbr.rel target = $region3
    $region8: #{tpu_custom_call.1} parent=1 // loop_exit
      _
    %457 = vsyncpa [#allocation3], 1
    %s458 = scalar_lea.sflag [#allocation3], 1
    %459 = vsyncpa %s458, 1

</llo_original>
